<compile_context>
chip_gen: v6e
topology: v6e:2x2x1
jax: 0.10.0
libtpu: 0.0.40
codegen_flags: <defaults>
</compile_context>

<pallas_src>
import functools

import jax
import jax.numpy as jnp
from jax import lax
from jax.experimental import pallas as pl
from jax.experimental.pallas import tpu as pltpu


def _round_up(x, m):
    return -(-x // m) * m


def _largest_divisor_tile(n_pad, max_tile):
    """Largest multiple of 128 that divides n_pad (a multiple of 128) and is <= max_tile."""
    q = n_pad // 128
    best = 1
    for d in range(1, q + 1):
        if q % d == 0 and 128 * d <= max_tile:
            best = d
    return 128 * best


# ---------------- fused kernel: Â resident in VMEM across all K hops ----------------
def _sgc_resident_kernel(x_ref, w_ref, b_ref, a_ref, o_ref, *, K):
    """out = Â^K (X Wᵀ) + b with the whole problem resident in VMEM.

    Â is bf16 (half the bytes, full-rate MXU); X·Wᵀ and all accumulation stay f32.
    Â is fetched from HBM exactly once and reused for every hop; H never leaves VMEM.
    """
    h = jnp.dot(x_ref[...], w_ref[...], preferred_element_type=jnp.float32)
    for _ in range(K):  # K = num_layers, small static int
        h = jnp.dot(a_ref[...], h.astype(jnp.bfloat16),
                    preferred_element_type=jnp.float32)
    o_ref[...] = h + b_ref[...]


# ---------------- streaming fallback: tiled matmul, accumulate into o_ref -----------
def _mm_kernel(a_ref, b_ref, o_ref):
    @pl.when(pl.program_id(1) == 0)
    def _():
        o_ref[...] = jnp.zeros_like(o_ref)

    o_ref[...] += jnp.dot(a_ref[...], b_ref[...], preferred_element_type=jnp.float32)


def _mm_bias_kernel(a_ref, b_ref, bias_ref, o_ref):
    @pl.when(pl.program_id(1) == 0)
    def _():
        o_ref[...] = jnp.zeros_like(o_ref)

    o_ref[...] += jnp.dot(a_ref[...], b_ref[...], preferred_element_type=jnp.float32)

    @pl.when(pl.program_id(1) == pl.num_programs(1) - 1)
    def _():
        o_ref[...] += bias_ref[...]


def _tiled_matmul(a, b, bias2d, *, tm, tk):
    """O[M, C] = A[M, K] @ B[K, C] (+ bias), f32 accumulation directly in the output block."""
    m, kdim = a.shape
    ncol = b.shape[1]  # lane-dense (multiple of 128)
    assert m % tm == 0 and kdim % tk == 0
    grid = (m // tm, kdim // tk)

    in_specs = [
        pl.BlockSpec((tm, tk), lambda i, k: (i, k)),
        pl.BlockSpec((tk, ncol), lambda i, k: (k, 0)),
    ]
    operands = [a, b]
    kernel = _mm_kernel
    if bias2d is not None:
        in_specs.append(pl.BlockSpec((1, ncol), lambda i, k: (0, 0)))
        operands.append(bias2d)
        kernel = _mm_bias_kernel

    return pl.pallas_call(
        kernel,
        out_shape=jax.ShapeDtypeStruct((m, ncol), jnp.float32),
        grid_spec=pltpu.PrefetchScalarGridSpec(
            num_scalar_prefetch=0,
            grid=grid,
            in_specs=in_specs,
            out_specs=pl.BlockSpec((tm, ncol), lambda i, k: (i, 0)),
        ),
        compiler_params=pltpu.CompilerParams(
            dimension_semantics=("parallel", "arbitrary")),
    )(*operands)


# ---------------- plain-JAX glue: gcn_norm -> dense Â -------------------------------
def _gcn_dense_adj(edge_index, num_nodes):
    """gcn_norm with added self-loops -> dense Â [N, N] (f32).

    Matches torch_geometric gcn_norm (flow source->target): deg = scatter_add(1, col),
    norm_e = deg^{-1/2}[row] * deg^{-1/2}[col], messages from row aggregated at col
    => Â[col, row] += norm_e.
    """
    n = num_nodes
    row, col = edge_index[0], edge_index[1]
    loop = jnp.arange(n, dtype=edge_index.dtype)
    row = jnp.concatenate([row, loop])
    col = jnp.concatenate([col, loop])
    ew = jnp.ones(row.shape[0], jnp.float32)
    deg = jnp.zeros((n,), jnp.float32).at[col].add(ew)
    dis = jnp.where(deg > 0.0, lax.rsqrt(deg), 0.0)
    norm = dis[row] * ew * dis[col]
    return jnp.zeros((n, n), jnp.float32).at[col, row].add(norm)


def sgc_forward(x, edge_index, weight, bias, K, *, force_tiled=False, tm=None, tk=None):
    """x: [N, F] f32, edge_index: [2, E] i32, weight: [C, F], bias: [C]."""
    n, f = x.shape
    c = weight.shape[0]

    a_hat = _gcn_dense_adj(edge_index, n)  # [N, N] f32 dense (see TODO for sparse)

    # ---- minimal padding: lanes to 128, rows to 128 (zero padding keeps math exact)
    c_pad = _round_up(c, 128)
    f_pad = _round_up(f, 128)
    n_pad = _round_up(n, 128)

    x_p = jnp.zeros((n_pad, f_pad), jnp.float32).at[:n, :f].set(x.astype(jnp.float32))
    a_p = (jnp.zeros((n_pad, n_pad), jnp.float32).at[:n, :n].set(a_hat)
           .astype(jnp.bfloat16))                                    # bf16 Â
    w_p = jnp.zeros((f_pad, c_pad), jnp.float32).at[:f, :c].set(
        weight.T.astype(jnp.float32))
    b_p = jnp.zeros((1, c_pad), jnp.float32).at[0, :c].set(bias.astype(jnp.float32))

    # ---- resident path: whole problem in VMEM, Â read from HBM once -------------
    resident_bytes = (n_pad * n_pad * 2            # Â  (bf16)
                      + n_pad * f_pad * 4          # X
                      + f_pad * c_pad * 4          # Wᵀ
                      + 3 * n_pad * c_pad * 4      # H f32 + bf16 copy + out
                      + c_pad * 4)                 # bias
    if (not force_tiled) and resident_bytes <= 28 * 1024 * 1024:
        vmem_limit = min(max(2 * resident_bytes, 32 << 20), 48 << 20)
        out = pl.pallas_call(
            functools.partial(_sgc_resident_kernel, K=K),
            out_shape=jax.ShapeDtypeStruct((n_pad, c_pad), jnp.float32),
            in_specs=[pl.BlockSpec(memory_space=pltpu.MemorySpace.VMEM)] * 4,
            out_specs=pl.BlockSpec(memory_space=pltpu.MemorySpace.VMEM),
            compiler_params=pltpu.CompilerParams(vmem_limit_bytes=vmem_limit),
        )(x_p, w_p, b_p, a_p)
        return out[:n, :c]

    # ---- streaming path: Â too big for VMEM (or forced for testing) -------------
    if tm is None:
        tm = _largest_divisor_tile(n_pad, min(512, max(128, n_pad // 2)))
    if tk is None:
        tk = _largest_divisor_tile(n_pad, 1024)
    assert n_pad % tm == 0 and n_pad % tk == 0

    # out = Â^K (X Wᵀ) + b : apply the narrow linear first (F -> 128 lanes)
    h = _tiled_matmul(x_p, w_p, b_p if K == 0 else None, tm=tm, tk=f_pad)
    for i in range(K):
        h_bf = h.astype(jnp.bfloat16)              # bf16 operand, f32 accumulation
        h = _tiled_matmul(a_p, h_bf, b_p if i == K - 1 else None, tm=tm, tk=tk)
    return h[:n, :c]


def sgc_reference(x, edge_index, weight, bias, K):
    a_hat = _gcn_dense_adj(edge_index, x.shape[0])
    h = x.astype(jnp.float32)
    for _ in range(K):
        h = a_hat @ h
    return h @ weight.T + bias[None, :]


if __name__ == "__main__":
    key = jax.random.PRNGKey(0)
    kx, kw, kb, kx2, kw2, kb2 = jax.random.split(key, 6)

    # --- Test 1: module-consistent small shapes (resident-Â path) --------------
    # SGC(feature=32, hidden=<unused>, classes=8, dropout=<unused>, num_layers=2)
    N, FEAT, CLASSES, K = 16, 32, 8, 2
    x = jax.random.normal(kx, (N, FEAT), dtype=jnp.float32)
    src = jnp.arange(N, dtype=jnp.int32)
    dst = (src + 1) % N
    edge_index = jnp.stack(
        [jnp.concatenate([src, dst]), jnp.concatenate([dst, src])], axis=0
    )
    weight = jax.random.normal(kw, (CLASSES, FEAT), dtype=jnp.float32) * 0.1
    bias = jax.random.normal(kb, (CLASSES,), dtype=jnp.float32) * 0.1

    out = sgc_forward(x, edge_index, weight, bias, K)
    jax.block_until_ready(out)
    ref = sgc_reference(x, edge_index, weight, bias, K)
    assert out.shape == (N, CLASSES)
    assert jnp.allclose(out, ref, atol=3e-2, rtol=3e-2), "small-graph mismatch"

    # --- Test 2: larger graph (still resident path, N padded to 640 not 1024) --
    N2 = 600
    x2 = jax.random.normal(kx2, (N2, FEAT), dtype=jnp.float32)
    src2 = jnp.arange(N2, dtype=jnp.int32)
    ring = (src2 + 1) % N2
    jump = (src2 * 7 + 3) % N2
    edge_index2 = jnp.stack(
        [jnp.concatenate([src2, ring, src2, jump]),
         jnp.concatenate([ring, src2, jump, src2])], axis=0
    )
    weight2 = jax.random.normal(kw2, (CLASSES, FEAT), dtype=jnp.float32) * 0.1
    bias2 = jax.random.normal(kb2, (CLASSES,), dtype=jnp.float32) * 0.1

    out2 = sgc_forward(x2, edge_index2, weight2, bias2, K)
    jax.block_until_ready(out2)
    ref2 = sgc_reference(x2, edge_index2, weight2, bias2, K)
    assert out2.shape == (N2, CLASSES)
    assert jnp.allclose(out2, ref2, atol=3e-2, rtol=3e-2), "large-graph mismatch"

    # --- Test 3: force the streaming path to exercise the multi-tile accumulator
    out3 = sgc_forward(x2, edge_index2, weight2, bias2, K,
                       force_tiled=True, tm=128, tk=128)
    jax.block_until_ready(out3)
    assert out3.shape == (N2, CLASSES)
    assert jnp.allclose(out3, ref2, atol=3e-2, rtol=3e-2), "tiled-path mismatch"

    print("KERNEL_OK")
</pallas_src>

<mosaic_0001>
module attributes {stable_mosaic.version = 11 : i64} {
  func.func @_sgc_resident_kernel(%arg0: memref<128x128xf32, #tpu.memory_space<vmem>>, %arg1: memref<128x128xf32, #tpu.memory_space<vmem>>, %arg2: memref<1x128xf32, #tpu.memory_space<vmem>>, %arg3: memref<128x128xbf16, #tpu.memory_space<vmem>>, %arg4: memref<128x128xf32, #tpu.memory_space<vmem>>) attributes {dimension_semantics = [], scalar_prefetch = 0 : i64, scratch_operands = 0 : i64, tpu.core_type = #tpu.core_type<tc>} {
    %c0 = arith.constant 0 : index
    %c0_0 = arith.constant 0 : index
    %0 = vector.load %arg0[%c0, %c0_0] : memref<128x128xf32, #tpu.memory_space<vmem>>, vector<128x128xf32>
    %c0_1 = arith.constant 0 : index
    %c0_2 = arith.constant 0 : index
    %1 = vector.load %arg1[%c0_1, %c0_2] : memref<128x128xf32, #tpu.memory_space<vmem>>, vector<128x128xf32>
    %cst = arith.constant dense<0.000000e+00> : vector<128x128xf32>
    %2 = tpu.matmul %0, %1, %cst {dimension_numbers = #tpu.dot_dimension_numbers<[1], [0], [0], [1], [0, 0, 1, 1], [], []>} : vector<128x128xf32>, vector<128x128xf32>, vector<128x128xf32> -> vector<128x128xf32>
    %c0_3 = arith.constant 0 : index
    %c0_4 = arith.constant 0 : index
    %3 = vector.load %arg3[%c0_3, %c0_4] : memref<128x128xbf16, #tpu.memory_space<vmem>>, vector<128x128xbf16>
    %4 = arith.truncf %2 : vector<128x128xf32> to vector<128x128xbf16>
    %cst_5 = arith.constant dense<0.000000e+00> : vector<128x128xf32>
    %5 = tpu.matmul %3, %4, %cst_5 {dimension_numbers = #tpu.dot_dimension_numbers<[1], [0], [0], [1], [0, 0, 1, 1], [], []>} : vector<128x128xbf16>, vector<128x128xbf16>, vector<128x128xf32> -> vector<128x128xf32>
    %c0_6 = arith.constant 0 : index
    %c0_7 = arith.constant 0 : index
    %6 = vector.load %arg3[%c0_6, %c0_7] : memref<128x128xbf16, #tpu.memory_space<vmem>>, vector<128x128xbf16>
    %7 = arith.truncf %5 : vector<128x128xf32> to vector<128x128xbf16>
    %cst_8 = arith.constant dense<0.000000e+00> : vector<128x128xf32>
    %8 = tpu.matmul %6, %7, %cst_8 {dimension_numbers = #tpu.dot_dimension_numbers<[1], [0], [0], [1], [0, 0, 1, 1], [], []>} : vector<128x128xbf16>, vector<128x128xbf16>, vector<128x128xf32> -> vector<128x128xf32>
    %c0_9 = arith.constant 0 : index
    %c0_10 = arith.constant 0 : index
    %9 = vector.load %arg2[%c0_9, %c0_10] : memref<1x128xf32, #tpu.memory_space<vmem>>, vector<1x128xf32>
    %10 = vector.broadcast %9 : vector<1x128xf32> to vector<128x128xf32>
    %11 = arith.addf %8, %10 : vector<128x128xf32>
    %c0_11 = arith.constant 0 : index
    %c0_12 = arith.constant 0 : index
    %12 = vector.load %arg4[%c0_11, %c0_12] : memref<128x128xf32, #tpu.memory_space<vmem>>, vector<128x128xf32>
    tpu.vector_store %arg4[%c0_11, %c0_12], %11 {strides = array<i32>} : memref<128x128xf32, #tpu.memory_space<vmem>>, vector<128x128xf32>,
    return
  }
}

</mosaic_0001>

<llo_original>
// kernel: tpu_custom_call.1
$region0: #{tpu_custom_call.1}
  #allocation0 [shape = 'u32[]', space=smem, size = 0x4, offset = 0x4, fixed_abs, tag = 'smem constant byte address 0x4 - core index']
  #allocation1 [shape = 'u32[144,128]{1,0:T(1,128)}', space=vmem, size = 0x12000, scoped, tag = 'internal scratch']
  %s0 = inlined_call_operand.hbm [shape: f32[128,128], index: 0, kind: input, shape index: {}]
  %s1 = inlined_call_operand.hbm [shape: f32[128,128], index: 1, kind: input, shape index: {}]
  %s2 = inlined_call_operand.vmem [shape: f32[1,128], index: 2, kind: input, shape index: {}]
  %s3 = inlined_call_operand.hbm [shape: bf16[128,128], index: 3, kind: input, shape index: {}]
  %s4 = inlined_call_operand.hbm [shape: f32[128,128], index: 4, kind: output, shape index: {}]
  %s5 = sld [smem:[#allocation0]]
  $region38: #{tpu_custom_call.1} parent=0
    _
  %s7 = ssub.s32 1, %s5
  %s8 = scalar_select 0, %s7, %s5
  $region1: #{tpu_custom_call.1} parent=0
    #allocation2 [shape = 'u8[65536]{0}', space=vmem, size = 0x10000, scoped, tag = 'input window, operand 0, single buffered']
    #allocation3 [shape = 's32[1]{0}', space=sflag, size = 0x4, scoped, tag = 'scoped memory for tpu_custom_call.1']
    #allocation4 [shape = 's32[1]{0}', space=sflag, size = 0x4, scoped, tag = 'scoped memory for tpu_custom_call.1']
    #allocation5 [shape = 'u8[65536]{0}', space=vmem, size = 0x10000, scoped, tag = 'input window, operand 1, single buffered']
    #allocation6 [shape = 's32[1]{0}', space=sflag, size = 0x4, scoped, tag = 'scoped memory for tpu_custom_call.1']
    #allocation7 [shape = 'u8[32768]{0}', space=vmem, size = 0x8000, scoped, tag = 'input window, operand 3, single buffered']
    #allocation8 [shape = 'u8[65536]{0}', space=vmem, size = 0x10000, scoped, tag = 'output window, operand 0, single buffered']
    %9 = vsyncpa [#allocation3], 0
    %10 = vsyncpa [#allocation6], 0
    %11 = vsyncpa [#allocation4], 0
    // Predicated region
    $region2: #{tpu_custom_call.1} parent=1 // pred_check
      _
    $region3: #{tpu_custom_call.1} parent=1 // pred_check_branch
      %13 = sbr.rel (0) target = $region5
    $region4: #{tpu_custom_call.1} parent=1 // pred_region
      %s15 = ssub.s32 2048, 2048
      %16 = vsyncadd [#allocation3], %s15
      %s17 = sshll.u32 [#allocation2], 4
      %s18 = int_to_ptr.vmem [resolvable:$true] %s17
      %23 = dma.hbm_to_vmem [thread:$0]  %s0, 2048, %s18, [#allocation3], 128, 128, 8
    $region5: #{tpu_custom_call.1} parent=1 // pred_fallthru
      _
    // Predicated region
    $region6: #{tpu_custom_call.1} parent=1 // pred_check
      _
    $region7: #{tpu_custom_call.1} parent=1 // pred_check_branch
      %25 = sbr.rel (0) target = $region9
    $region8: #{tpu_custom_call.1} parent=1 // pred_region
      %s27 = ssub.s32 2048, 2048
      %28 = vsyncadd [#allocation6], %s27
      %s29 = sshll.u32 [#allocation5], 4
      %s30 = int_to_ptr.vmem [resolvable:$true] %s29
      %35 = dma.hbm_to_vmem [thread:$0]  %s1, 2048, %s30, [#allocation6], 128, 128, 8
    $region9: #{tpu_custom_call.1} parent=1 // pred_fallthru
      _
    // Predicated region
    $region10: #{tpu_custom_call.1} parent=1 // pred_check
      _
    $region11: #{tpu_custom_call.1} parent=1 // pred_check_branch
      %37 = sbr.rel (0) target = $region13
    $region12: #{tpu_custom_call.1} parent=1 // pred_region
      _
    $region13: #{tpu_custom_call.1} parent=1 // pred_fallthru
      _
    // Predicated region
    $region14: #{tpu_custom_call.1} parent=1 // pred_check
      _
    $region15: #{tpu_custom_call.1} parent=1 // pred_check_branch
      %39 = sbr.rel (0) target = $region17
    $region16: #{tpu_custom_call.1} parent=1 // pred_region
      %s41 = ssub.s32 1024, 1024
      %42 = vsyncadd [#allocation6], %s41
      %s43 = sshll.u32 [#allocation7], 4
      %s44 = int_to_ptr.vmem [resolvable:$true] %s43
      %49 = dma.hbm_to_vmem [thread:$0]  %s3, 1024, %s44, [#allocation6], 64, 64, 4
    $region17: #{tpu_custom_call.1} parent=1 // pred_fallthru
      _
    // Predicated region
    $region18: #{tpu_custom_call.1} parent=1 // pred_check
      _
    $region19: #{tpu_custom_call.1} parent=1 // pred_check_branch
      %51 = sbr.rel (0) target = $region21
    $region20: #{tpu_custom_call.1} parent=1 // pred_region
      %52 = dma.done [#allocation3], 2048
    $region21: #{tpu_custom_call.1} parent=1 // pred_fallthru
      _
    // Predicated region
    $region22: #{tpu_custom_call.1} parent=1 // pred_check
      _
    $region23: #{tpu_custom_call.1} parent=1 // pred_check_branch
      %54 = sbr.rel (0) target = $region25
    $region24: #{tpu_custom_call.1} parent=1 // pred_region
      %55 = dma.done [#allocation6], 2048
    $region25: #{tpu_custom_call.1} parent=1 // pred_fallthru
      _
    // Predicated region
    $region26: #{tpu_custom_call.1} parent=1 // pred_check
      _
    $region27: #{tpu_custom_call.1} parent=1 // pred_check_branch
      %57 = sbr.rel (0) target = $region29
    $region28: #{tpu_custom_call.1} parent=1 // pred_region
      %58 = dma.done [#allocation6], 1024
    $region29: #{tpu_custom_call.1} parent=1 // pred_fallthru
      _
    %v60 = vld [vmem:[#allocation2] sm:$0xff]
    %v61 = vld [vmem:[#allocation2 + $0x8] sm:$0xff]
    %v62 = vld [vmem:[#allocation2 + $0x10] sm:$0xff]
    %v63 = vld [vmem:[#allocation2 + $0x18] sm:$0xff]
    %v64 = vld [vmem:[#allocation2 + $0x20] sm:$0xff]
    %v65 = vld [vmem:[#allocation2 + $0x28] sm:$0xff]
    %v66 = vld [vmem:[#allocation2 + $0x30] sm:$0xff]
    %v67 = vld [vmem:[#allocation2 + $0x38] sm:$0xff]
    %v68 = vld [vmem:[#allocation2 + $0x40] sm:$0xff]
    %v69 = vld [vmem:[#allocation2 + $0x48] sm:$0xff]
    %v70 = vld [vmem:[#allocation2 + $0x50] sm:$0xff]
    %v71 = vld [vmem:[#allocation2 + $0x58] sm:$0xff]
    %v72 = vld [vmem:[#allocation2 + $0x60] sm:$0xff]
    %v73 = vld [vmem:[#allocation2 + $0x68] sm:$0xff]
    %v74 = vld [vmem:[#allocation2 + $0x70] sm:$0xff]
    %v75 = vld [vmem:[#allocation2 + $0x78] sm:$0xff]
    %v76 = vld [vmem:[#allocation5] sm:$0xff]
    %v77 = vld [vmem:[#allocation5 + $0x8] sm:$0xff]
    %v78 = vld [vmem:[#allocation5 + $0x10] sm:$0xff]
    %v79 = vld [vmem:[#allocation5 + $0x18] sm:$0xff]
    %v80 = vld [vmem:[#allocation5 + $0x20] sm:$0xff]
    %v81 = vld [vmem:[#allocation5 + $0x28] sm:$0xff]
    %v82 = vld [vmem:[#allocation5 + $0x30] sm:$0xff]
    %v83 = vld [vmem:[#allocation5 + $0x38] sm:$0xff]
    %v84 = vld [vmem:[#allocation5 + $0x40] sm:$0xff]
    %v85 = vld [vmem:[#allocation5 + $0x48] sm:$0xff]
    %v86 = vld [vmem:[#allocation5 + $0x50] sm:$0xff]
    %v87 = vld [vmem:[#allocation5 + $0x58] sm:$0xff]
    %v88 = vld [vmem:[#allocation5 + $0x60] sm:$0xff]
    %v89 = vld [vmem:[#allocation5 + $0x68] sm:$0xff]
    %v90 = vld [vmem:[#allocation5 + $0x70] sm:$0xff]
    %v91 = vld [vmem:[#allocation5 + $0x78] sm:$0xff]
    %92 = vmatprep.subr.mxu0 0.0
    %93 = vmatpush1.msra.mxu0 %v91
    %94 = vmatprep.subr.mxu0 0.0
    %95 = vmatpush1.msra.mxu0 %v90
    %96 = vmatprep.subr.mxu0 0.0
    %97 = vmatpush1.msra.mxu0 %v89
    %98 = vmatprep.subr.mxu0 0.0
    %99 = vmatpush1.msra.mxu0 %v88
    %100 = vmatprep.subr.mxu0 0.0
    %101 = vmatpush1.msra.mxu0 %v87
    %102 = vmatprep.subr.mxu0 0.0
    %103 = vmatpush1.msra.mxu0 %v86
    %104 = vmatprep.subr.mxu0 0.0
    %105 = vmatpush1.msra.mxu0 %v85
    %106 = vmatprep.subr.mxu0 0.0
    %107 = vmatpush1.msra.mxu0 %v84
    %108 = vmatprep.subr.mxu0 0.0
    %109 = vmatpush1.msra.mxu0 %v83
    %110 = vmatprep.subr.mxu0 0.0
    %111 = vmatpush1.msra.mxu0 %v82
    %112 = vmatprep.subr.mxu0 0.0
    %113 = vmatpush1.msra.mxu0 %v81
    %114 = vmatprep.subr.mxu0 0.0
    %115 = vmatpush1.msra.mxu0 %v80
    %116 = vmatprep.subr.mxu0 0.0
    %117 = vmatpush1.msra.mxu0 %v79
    %118 = vmatprep.subr.mxu0 0.0
    %119 = vmatpush1.msra.mxu0 %v78
    %120 = vmatprep.subr.mxu0 0.0
    %121 = vmatpush1.msra.mxu0 %v77
    %122 = vmatprep.subr.mxu0 0.0
    %123 = vmatpush1.msra.mxu0 %v76
    %124 = vmatprep.subr.mxu0 0.0
    %125 = vmatpush2.msra.mxu0 0.0
    %126 = vmatprep.subr.mxu0 0.0
    %127 = vmatpush2.msra.mxu0 0.0
    %128 = vmatprep.subr.mxu0 0.0
    %129 = vmatpush2.msra.mxu0 0.0
    %130 = vmatprep.subr.mxu0 0.0
    %131 = vmatpush2.msra.mxu0 0.0
    %132 = vmatprep.subr.mxu0 0.0
    %133 = vmatpush2.msra.mxu0 0.0
    %134 = vmatprep.subr.mxu0 0.0
    %135 = vmatpush2.msra.mxu0 0.0
    %136 = vmatprep.subr.mxu0 0.0
    %137 = vmatpush2.msra.mxu0 0.0
    %138 = vmatprep.subr.mxu0 0.0
    %139 = vmatpush2.msra.mxu0 0.0
    %140 = vmatprep.subr.mxu0 0.0
    %141 = vmatpush2.msra.mxu0 0.0
    %142 = vmatprep.subr.mxu0 0.0
    %143 = vmatpush2.msra.mxu0 0.0
    %144 = vmatprep.subr.mxu0 0.0
    %145 = vmatpush2.msra.mxu0 0.0
    %146 = vmatprep.subr.mxu0 0.0
    %147 = vmatpush2.msra.mxu0 0.0
    %148 = vmatprep.subr.mxu0 0.0
    %149 = vmatpush2.msra.mxu0 0.0
    %150 = vmatprep.subr.mxu0 0.0
    %151 = vmatpush2.msra.mxu0 0.0
    %152 = vmatprep.subr.mxu0 0.0
    %153 = vmatpush2.msra.mxu0 0.0
    %154 = vmatprep.subr.mxu0 0.0
    %155 = vmatpush2.msra.mxu0 0.0
    %156 = vmatprep.mubr.f32.mxu0 0.0
    %157 = vmatmul.mubr.f32.gmra.mxu0 %v60
    %v158 = vpop.f32.mrf.mxu0
    %v159 = vadd.f32 0.0, %v158
    %v160 = vpop.f32.mrf.mxu0
    %161 = vmatprep.mubr.f32.mxu0 0.0
    %162 = vmatmul.mubr.f32.gmra.mxu0 %v61
    %v163 = vpop.f32.mrf.mxu0
    %v164 = vadd.f32 0.0, %v163
    %v165 = vpop.f32.mrf.mxu0
    %166 = vmatprep.mubr.f32.mxu0 0.0
    %167 = vmatmul.mubr.f32.gmra.mxu0 %v62
    %v168 = vpop.f32.mrf.mxu0
    %v169 = vadd.f32 0.0, %v168
    %v170 = vpop.f32.mrf.mxu0
    %171 = vmatprep.mubr.f32.mxu0 0.0
    %172 = vmatmul.mubr.f32.gmra.mxu0 %v63
    %v173 = vpop.f32.mrf.mxu0
    %v174 = vadd.f32 0.0, %v173
    %v175 = vpop.f32.mrf.mxu0
    %176 = vmatprep.mubr.f32.mxu0 0.0
    %177 = vmatmul.mubr.f32.gmra.mxu0 %v64
    %v178 = vpop.f32.mrf.mxu0
    %v179 = vadd.f32 0.0, %v178
    %v180 = vpop.f32.mrf.mxu0
    %181 = vmatprep.mubr.f32.mxu0 0.0
    %182 = vmatmul.mubr.f32.gmra.mxu0 %v65
    %v183 = vpop.f32.mrf.mxu0
    %v184 = vadd.f32 0.0, %v183
    %v185 = vpop.f32.mrf.mxu0
    %186 = vmatprep.mubr.f32.mxu0 0.0
    %187 = vmatmul.mubr.f32.gmra.mxu0 %v66
    %v188 = vpop.f32.mrf.mxu0
    %v189 = vadd.f32 0.0, %v188
    %v190 = vpop.f32.mrf.mxu0
    %191 = vmatprep.mubr.f32.mxu0 0.0
    %192 = vmatmul.mubr.f32.gmra.mxu0 %v67
    %v193 = vpop.f32.mrf.mxu0
    %v194 = vadd.f32 0.0, %v193
    %v195 = vpop.f32.mrf.mxu0
    %196 = vmatprep.mubr.f32.mxu0 0.0
    %197 = vmatmul.mubr.f32.gmra.mxu0 %v68
    %v198 = vpop.f32.mrf.mxu0
    %v199 = vadd.f32 0.0, %v198
    %v200 = vpop.f32.mrf.mxu0
    %201 = vmatprep.mubr.f32.mxu0 0.0
    %202 = vmatmul.mubr.f32.gmra.mxu0 %v69
    %v203 = vpop.f32.mrf.mxu0
    %v204 = vadd.f32 0.0, %v203
    %v205 = vpop.f32.mrf.mxu0
    %206 = vmatprep.mubr.f32.mxu0 0.0
    %207 = vmatmul.mubr.f32.gmra.mxu0 %v70
    %v208 = vpop.f32.mrf.mxu0
    %v209 = vadd.f32 0.0, %v208
    %v210 = vpop.f32.mrf.mxu0
    %211 = vmatprep.mubr.f32.mxu0 0.0
    %212 = vmatmul.mubr.f32.gmra.mxu0 %v71
    %v213 = vpop.f32.mrf.mxu0
    %v214 = vadd.f32 0.0, %v213
    %v215 = vpop.f32.mrf.mxu0
    %216 = vmatprep.mubr.f32.mxu0 0.0
    %217 = vmatmul.mubr.f32.gmra.mxu0 %v72
    %v218 = vpop.f32.mrf.mxu0
    %v219 = vadd.f32 0.0, %v218
    %v220 = vpop.f32.mrf.mxu0
    %221 = vmatprep.mubr.f32.mxu0 0.0
    %222 = vmatmul.mubr.f32.gmra.mxu0 %v73
    %v223 = vpop.f32.mrf.mxu0
    %v224 = vadd.f32 0.0, %v223
    %v225 = vpop.f32.mrf.mxu0
    %226 = vmatprep.mubr.f32.mxu0 0.0
    %227 = vmatmul.mubr.f32.gmra.mxu0 %v74
    %v228 = vpop.f32.mrf.mxu0
    %v229 = vadd.f32 0.0, %v228
    %v230 = vpop.f32.mrf.mxu0
    %231 = vmatprep.mubr.f32.mxu0 0.0
    %232 = vmatmul.mubr.f32.gmra.mxu0 %v75
    %v233 = vpop.f32.mrf.mxu0
    %v234 = vadd.f32 0.0, %v233
    %v235 = vpop.f32.mrf.mxu0
    %236 = vdwg.mxu0
    %v237 = vld [vmem:[#allocation7] sm:$0xf]
    %v238 = vld [vmem:[#allocation7 + $0x4] sm:$0xf]
    %v239 = vld [vmem:[#allocation7 + $0x8] sm:$0xf]
    %v240 = vld [vmem:[#allocation7 + $0xc] sm:$0xf]
    %v241 = vld [vmem:[#allocation7 + $0x10] sm:$0xf]
    %v242 = vld [vmem:[#allocation7 + $0x14] sm:$0xf]
    %v243 = vld [vmem:[#allocation7 + $0x18] sm:$0xf]
    %v244 = vld [vmem:[#allocation7 + $0x1c] sm:$0xf]
    %v245 = vld [vmem:[#allocation7 + $0x20] sm:$0xf]
    %v246 = vld [vmem:[#allocation7 + $0x24] sm:$0xf]
    %v247 = vld [vmem:[#allocation7 + $0x28] sm:$0xf]
    %v248 = vld [vmem:[#allocation7 + $0x2c] sm:$0xf]
    %v249 = vld [vmem:[#allocation7 + $0x30] sm:$0xf]
    %v250 = vld [vmem:[#allocation7 + $0x34] sm:$0xf]
    %v251 = vld [vmem:[#allocation7 + $0x38] sm:$0xf]
    %v252 = vld [vmem:[#allocation7 + $0x3c] sm:$0xf]
    %v253 = vpack.c.bf16 %v164, %v159
    %v254 = vpack.c.bf16 %v174, %v169
    %v255 = vpack.c.bf16 %v184, %v179
    %v256 = vpack.c.bf16 %v194, %v189
    %v257 = vpack.c.bf16 %v204, %v199
    %v258 = vpack.c.bf16 %v214, %v209
    %v259 = vpack.c.bf16 %v224, %v219
    %v260 = vpack.c.bf16 %v234, %v229
    %v277 = vunpack.c.l.b16 %v237
    %v278 = vunpack.c.l.b16 %v238
    %v279 = vunpack.c.l.b16 %v239
    %v280 = vunpack.c.l.b16 %v240
    %v281 = vunpack.c.l.b16 %v241
    %v282 = vunpack.c.l.b16 %v242
    %v283 = vunpack.c.l.b16 %v243
    %v284 = vunpack.c.l.b16 %v244
    %v285 = vunpack.c.l.b16 %v245
    %v286 = vunpack.c.l.b16 %v246
    %v287 = vunpack.c.l.b16 %v247
    %v288 = vunpack.c.l.b16 %v248
    %v289 = vunpack.c.l.b16 %v249
    %v290 = vunpack.c.l.b16 %v250
    %v291 = vunpack.c.l.b16 %v251
    %v292 = vunpack.c.l.b16 %v252
    %v293 = vpack.c.b16 %v278, %v277
    %v294 = vpack.c.b16 %v280, %v279
    %v295 = vpack.c.b16 %v282, %v281
    %v296 = vpack.c.b16 %v284, %v283
    %v297 = vpack.c.b16 %v286, %v285
    %v298 = vpack.c.b16 %v288, %v287
    %v299 = vpack.c.b16 %v290, %v289
    %v300 = vpack.c.b16 %v292, %v291
    %309 = vmatprep.subr.bf16.mxu0 0
    %310 = vmatpush1.bf16.msra.mxu0 %v260
    %311 = vmatprep.subr.bf16.mxu0 0
    %312 = vmatpush1.bf16.msra.mxu0 %v259
    %313 = vmatprep.subr.bf16.mxu0 0
    %314 = vmatpush1.bf16.msra.mxu0 %v258
    %315 = vmatprep.subr.bf16.mxu0 0
    %316 = vmatpush1.bf16.msra.mxu0 %v257
    %317 = vmatprep.subr.bf16.mxu0 0
    %318 = vmatpush1.bf16.msra.mxu0 %v256
    %319 = vmatprep.subr.bf16.mxu0 0
    %320 = vmatpush1.bf16.msra.mxu0 %v255
    %321 = vmatprep.subr.bf16.mxu0 0
    %322 = vmatpush1.bf16.msra.mxu0 %v254
    %323 = vmatprep.subr.bf16.mxu0 0
    %324 = vmatpush1.bf16.msra.mxu0 %v253
    %325 = vmatprep.subr.bf16.mxu0 0
    %326 = vmatpush2.bf16.msra.mxu0 0
    %327 = vmatprep.subr.bf16.mxu0 0
    %328 = vmatpush2.bf16.msra.mxu0 0
    %329 = vmatprep.subr.bf16.mxu0 0
    %330 = vmatpush2.bf16.msra.mxu0 0
    %331 = vmatprep.subr.bf16.mxu0 0
    %332 = vmatpush2.bf16.msra.mxu0 0
    %333 = vmatprep.subr.bf16.mxu0 0
    %334 = vmatpush2.bf16.msra.mxu0 0
    %335 = vmatprep.subr.bf16.mxu0 0
    %336 = vmatpush2.bf16.msra.mxu0 0
    %337 = vmatprep.subr.bf16.mxu0 0
    %338 = vmatpush2.bf16.msra.mxu0 0
    %339 = vmatprep.subr.bf16.mxu0 0
    %340 = vmatpush2.bf16.msra.mxu0 0
    %341 = vmatprep.mubr.bf16.mxu0 0
    %342 = vmatmul.mubr.bf16.gmra.mxu0 %v293
    %v343 = vpop.f32.mrf.mxu0
    %v344 = vadd.f32 0.0, %v343
    %v345 = vpop.f32.mrf.mxu0
    %v346 = vpop.f32.mrf.mxu0
    %v347 = vadd.f32 0.0, %v346
    %v348 = vpop.f32.mrf.mxu0
    %349 = vmatprep.mubr.bf16.mxu0 0
    %350 = vmatmul.mubr.bf16.gmra.mxu0 %v294
    %v351 = vpop.f32.mrf.mxu0
    %v352 = vadd.f32 0.0, %v351
    %v353 = vpop.f32.mrf.mxu0
    %v354 = vpop.f32.mrf.mxu0
    %v355 = vadd.f32 0.0, %v354
    %v356 = vpop.f32.mrf.mxu0
    %357 = vmatprep.mubr.bf16.mxu0 0
    %358 = vmatmul.mubr.bf16.gmra.mxu0 %v295
    %v359 = vpop.f32.mrf.mxu0
    %v360 = vadd.f32 0.0, %v359
    %v361 = vpop.f32.mrf.mxu0
    %v362 = vpop.f32.mrf.mxu0
    %v363 = vadd.f32 0.0, %v362
    %v364 = vpop.f32.mrf.mxu0
    %365 = vmatprep.mubr.bf16.mxu0 0
    %366 = vmatmul.mubr.bf16.gmra.mxu0 %v296
    %v367 = vpop.f32.mrf.mxu0
    %v368 = vadd.f32 0.0, %v367
    %v369 = vpop.f32.mrf.mxu0
    %v370 = vpop.f32.mrf.mxu0
    %v371 = vadd.f32 0.0, %v370
    %v372 = vpop.f32.mrf.mxu0
    %373 = vmatprep.mubr.bf16.mxu0 0
    %374 = vmatmul.mubr.bf16.gmra.mxu0 %v297
    %v375 = vpop.f32.mrf.mxu0
    %v376 = vadd.f32 0.0, %v375
    %v377 = vpop.f32.mrf.mxu0
    %v378 = vpop.f32.mrf.mxu0
    %v379 = vadd.f32 0.0, %v378
    %v380 = vpop.f32.mrf.mxu0
    %381 = vmatprep.mubr.bf16.mxu0 0
    %382 = vmatmul.mubr.bf16.gmra.mxu0 %v298
    %v383 = vpop.f32.mrf.mxu0
    %v384 = vadd.f32 0.0, %v383
    %v385 = vpop.f32.mrf.mxu0
    %v386 = vpop.f32.mrf.mxu0
    %v387 = vadd.f32 0.0, %v386
    %v388 = vpop.f32.mrf.mxu0
    %389 = vmatprep.mubr.bf16.mxu0 0
    %390 = vmatmul.mubr.bf16.gmra.mxu0 %v299
    %v391 = vpop.f32.mrf.mxu0
    %v392 = vadd.f32 0.0, %v391
    %v393 = vpop.f32.mrf.mxu0
    %v394 = vpop.f32.mrf.mxu0
    %v395 = vadd.f32 0.0, %v394
    %v396 = vpop.f32.mrf.mxu0
    %397 = vmatprep.mubr.bf16.mxu0 0
    %398 = vmatmul.mubr.bf16.gmra.mxu0 %v300
    %v399 = vpop.f32.mrf.mxu0
    %v400 = vadd.f32 0.0, %v399
    %v401 = vpop.f32.mrf.mxu0
    %v402 = vpop.f32.mrf.mxu0
    %v403 = vadd.f32 0.0, %v402
    %v404 = vpop.f32.mrf.mxu0
    %405 = vdwg.mxu0
    %v406 = vpack.c.bf16 %v347, %v344
    %v407 = vpack.c.bf16 %v355, %v352
    %v408 = vpack.c.bf16 %v363, %v360
    %v409 = vpack.c.bf16 %v371, %v368
    %v410 = vpack.c.bf16 %v379, %v376
    %v411 = vpack.c.bf16 %v387, %v384
    %v412 = vpack.c.bf16 %v395, %v392
    %v413 = vpack.c.bf16 %v403, %v400
    %v414 = vld [vmem:[%s2] sm:$0x1]
    %v416 = vlaneseq
    %v417 = vshrl.u32 %v416, 7
    %v418 = vsub.s32 0, %v417
    %v419 = vrot.slane %v414, %v418
    %421 = vmatprep.subr.bf16.mxu0 0
    %422 = vmatpush1.bf16.msra.mxu0 %v413
    %423 = vmatprep.subr.bf16.mxu0 0
    %424 = vmatpush1.bf16.msra.mxu0 %v412
    %425 = vmatprep.subr.bf16.mxu0 0
    %426 = vmatpush1.bf16.msra.mxu0 %v411
    %427 = vmatprep.subr.bf16.mxu0 0
    %428 = vmatpush1.bf16.msra.mxu0 %v410
    %429 = vmatprep.subr.bf16.mxu0 0
    %430 = vmatpush1.bf16.msra.mxu0 %v409
    %431 = vmatprep.subr.bf16.mxu0 0
    %432 = vmatpush1.bf16.msra.mxu0 %v408
    %433 = vmatprep.subr.bf16.mxu0 0
    %434 = vmatpush1.bf16.msra.mxu0 %v407
    %435 = vmatprep.subr.bf16.mxu0 0
    %436 = vmatpush1.bf16.msra.mxu0 %v406
    %437 = vmatprep.subr.bf16.mxu0 0
    %438 = vmatpush2.bf16.msra.mxu0 0
    %439 = vmatprep.subr.bf16.mxu0 0
    %440 = vmatpush2.bf16.msra.mxu0 0
    %441 = vmatprep.subr.bf16.mxu0 0
    %442 = vmatpush2.bf16.msra.mxu0 0
    %443 = vmatprep.subr.bf16.mxu0 0
    %444 = vmatpush2.bf16.msra.mxu0 0
    %445 = vmatprep.subr.bf16.mxu0 0
    %446 = vmatpush2.bf16.msra.mxu0 0
    %447 = vmatprep.subr.bf16.mxu0 0
    %448 = vmatpush2.bf16.msra.mxu0 0
    %449 = vmatprep.subr.bf16.mxu0 0
    %450 = vmatpush2.bf16.msra.mxu0 0
    %451 = vmatprep.subr.bf16.mxu0 0
    %452 = vmatpush2.bf16.msra.mxu0 0
    %453 = vmatprep.mubr.bf16.mxu0 0
    %454 = vmatmul.mubr.bf16.gmra.mxu0 %v293
    %v455 = vpop.f32.mrf.mxu0
    %v456 = vadd.f32 %v419, %v455
    %v457 = vpop.f32.mrf.mxu0
    %v458 = vpop.f32.mrf.mxu0
    %v459 = vadd.f32 %v419, %v458
    %v460 = vpop.f32.mrf.mxu0
    %461 = vmatprep.mubr.bf16.mxu0 0
    %462 = vmatmul.mubr.bf16.gmra.mxu0 %v294
    %v463 = vpop.f32.mrf.mxu0
    %v464 = vadd.f32 %v419, %v463
    %v465 = vpop.f32.mrf.mxu0
    %v466 = vpop.f32.mrf.mxu0
    %v467 = vadd.f32 %v419, %v466
    %v468 = vpop.f32.mrf.mxu0
    %469 = vmatprep.mubr.bf16.mxu0 0
    %470 = vmatmul.mubr.bf16.gmra.mxu0 %v295
    %v471 = vpop.f32.mrf.mxu0
    %v472 = vadd.f32 %v419, %v471
    %v473 = vpop.f32.mrf.mxu0
    %v474 = vpop.f32.mrf.mxu0
    %v475 = vadd.f32 %v419, %v474
    %v476 = vpop.f32.mrf.mxu0
    %477 = vmatprep.mubr.bf16.mxu0 0
    %478 = vmatmul.mubr.bf16.gmra.mxu0 %v296
    %v479 = vpop.f32.mrf.mxu0
    %v480 = vadd.f32 %v419, %v479
    %v481 = vpop.f32.mrf.mxu0
    %v482 = vpop.f32.mrf.mxu0
    %v483 = vadd.f32 %v419, %v482
    %v484 = vpop.f32.mrf.mxu0
    %485 = vmatprep.mubr.bf16.mxu0 0
    %486 = vmatmul.mubr.bf16.gmra.mxu0 %v297
    %v487 = vpop.f32.mrf.mxu0
    %v488 = vadd.f32 %v419, %v487
    %v489 = vpop.f32.mrf.mxu0
    %v490 = vpop.f32.mrf.mxu0
    %v491 = vadd.f32 %v419, %v490
    %v492 = vpop.f32.mrf.mxu0
    %493 = vmatprep.mubr.bf16.mxu0 0
    %494 = vmatmul.mubr.bf16.gmra.mxu0 %v298
    %v495 = vpop.f32.mrf.mxu0
    %v496 = vadd.f32 %v419, %v495
    %v497 = vpop.f32.mrf.mxu0
    %v498 = vpop.f32.mrf.mxu0
    %v499 = vadd.f32 %v419, %v498
    %v500 = vpop.f32.mrf.mxu0
    %501 = vmatprep.mubr.bf16.mxu0 0
    %502 = vmatmul.mubr.bf16.gmra.mxu0 %v299
    %v503 = vpop.f32.mrf.mxu0
    %v504 = vadd.f32 %v419, %v503
    %v505 = vpop.f32.mrf.mxu0
    %v506 = vpop.f32.mrf.mxu0
    %v507 = vadd.f32 %v419, %v506
    %v508 = vpop.f32.mrf.mxu0
    %509 = vmatprep.mubr.bf16.mxu0 0
    %510 = vmatmul.mubr.bf16.gmra.mxu0 %v300
    %v511 = vpop.f32.mrf.mxu0
    %v512 = vadd.f32 %v419, %v511
    %v513 = vpop.f32.mrf.mxu0
    %v514 = vpop.f32.mrf.mxu0
    %v515 = vadd.f32 %v419, %v514
    %v516 = vpop.f32.mrf.mxu0
    %517 = vdwg.mxu0
    %518 = vst [vmem:[#allocation8] sm:$0xff] %v456
    %519 = vst [vmem:[#allocation8 + $0x8] sm:$0xff] %v459
    %520 = vst [vmem:[#allocation8 + $0x10] sm:$0xff] %v464
    %521 = vst [vmem:[#allocation8 + $0x18] sm:$0xff] %v467
    %522 = vst [vmem:[#allocation8 + $0x20] sm:$0xff] %v472
    %523 = vst [vmem:[#allocation8 + $0x28] sm:$0xff] %v475
    %524 = vst [vmem:[#allocation8 + $0x30] sm:$0xff] %v480
    %525 = vst [vmem:[#allocation8 + $0x38] sm:$0xff] %v483
    %526 = vst [vmem:[#allocation8 + $0x40] sm:$0xff] %v488
    %527 = vst [vmem:[#allocation8 + $0x48] sm:$0xff] %v491
    %528 = vst [vmem:[#allocation8 + $0x50] sm:$0xff] %v496
    %529 = vst [vmem:[#allocation8 + $0x58] sm:$0xff] %v499
    %530 = vst [vmem:[#allocation8 + $0x60] sm:$0xff] %v504
    %531 = vst [vmem:[#allocation8 + $0x68] sm:$0xff] %v507
    %532 = vst [vmem:[#allocation8 + $0x70] sm:$0xff] %v512
    %533 = vst [vmem:[#allocation8 + $0x78] sm:$0xff] %v515
    // Predicated region
    $region30: #{tpu_custom_call.1} parent=1 // pred_check
      _
    $region31: #{tpu_custom_call.1} parent=1 // pred_check_branch
      %535 = sbr.rel (0) target = $region33
    $region32: #{tpu_custom_call.1} parent=1 // pred_region
      %s537 = ssub.s32 2048, 2048
      %538 = vsyncadd [#allocation4], %s537
      %s539 = sshll.u32 [#allocation8], 4
      %s540 = int_to_ptr.vmem [resolvable:$true] %s539
      %545 = dma.vmem_to_hbm [thread:$0]  %s540, 2048, %s4, [#allocation4], 128, 128, 8
    $region33: #{tpu_custom_call.1} parent=1 // pred_fallthru
      _
    // Predicated region
    $region34: #{tpu_custom_call.1} parent=1 // pred_check
      _
    $region35: #{tpu_custom_call.1} parent=1 // pred_check_branch
      %547 = sbr.rel (0) target = $region37
    $region36: #{tpu_custom_call.1} parent=1 // pred_region
      %548 = dma.done [#allocation4], 2048
    $region37: #{tpu_custom_call.1} parent=1 // pred_fallthru
      _
    %549 = vsyncpa [#allocation3], 1
    %550 = vsyncpa [#allocation6], 1
    %551 = vsyncpa [#allocation4], 1

</llo_original>
